<compile_context>
chip_gen: v7x
topology: tpu7x:2x2x1
jax: 0.10.0
libtpu: 0.0.40
codegen_flags: <defaults>
</compile_context>

<pallas_src>
import functools

import jax
import jax.numpy as jnp
from jax.experimental import pallas as pl
from jax.experimental.pallas import tpu as pltpu


def _round_up(x, m):
    return (x + m - 1) // m * m


def _cdiv(a, b):
    return -(-a // b)


def fasttext_kernel(counts_ref, emb_ref, wf_ref, bf_ref, out_ref, acc_ref, *,
                    inv_len):
    # counts_ref : (TB, TK)  bf16 integer token counts for this (batch, vocab) tile
    # emb_ref    : (TK, E)   bf16 embedding rows for this vocab tile
    # wf_ref     : (E, Cp)   bf16 fused (fc ∘ fc2) weight, transposed + lane-padded
    # bf_ref     : (1, Cp)   f32  fused bias, lane-padded
    # out_ref    : (TB, Cp)  f32  logits tile (written only on the last vocab step)
    # acc_ref    : (TB, E)   f32  VMEM accumulator:  sum_v counts[b, v] * emb[v]
    k = pl.program_id(1)

    @pl.when(k == 0)
    def _init():
        acc_ref[...] = jnp.zeros_like(acc_ref)

    acc_ref[...] += jnp.dot(counts_ref[...], emb_ref[...],
                            preferred_element_type=jnp.float32)

    @pl.when(k == pl.num_programs(1) - 1)
    def _finalize():
        # mean over sequence (1/L applied to the exact f32 accumulator), then
        # the fused linear projection.
        m = (acc_ref[...] * inv_len).astype(jnp.bfloat16)
        o = jnp.dot(m, wf_ref[...], preferred_element_type=jnp.float32)
        out_ref[...] = (o + bf_ref[...]).astype(out_ref.dtype)


def fasttext_forward(tokens, embedding, w2, b2, w1, b1, *, tb=512, tk=2048):
    """tokens: (B, L) int32; embedding: (V, E); w2: (E, E); b2: (E,);
    w1: (C, E); b1: (C,)."""
    B, L = tokens.shape
    V, E = embedding.shape
    C = w1.shape[0]

    # --- fuse fc2 -> fc (valid: no activation between them) ------------------
    #   o = (m @ w2.T + b2) @ w1.T + b1 = m @ (w1 @ w2).T + (w1 @ b2 + b1)
    w_fused = (w1 @ w2).astype(jnp.float32)            # (C, E)
    b_fused = (w1 @ b2 + b1).astype(jnp.float32)       # (C,)

    # --- vocab (contraction) tiling ------------------------------------------
    V_pad = _round_up(V, 128)
    k_steps = max(1, _cdiv(V_pad, tk))
    TK = _round_up(_cdiv(V_pad, k_steps), 128)
    V_pad = TK * k_steps

    # --- batch tiling (>= 2 steps when batch is big enough, for v7x megacore) -
    TB = min(tb, _round_up(B, 16))
    if B >= 32 and _round_up(B, TB) // TB < 2:
        TB = _round_up(_cdiv(B, 2), 16)
    B_pad = _round_up(B, TB)

    # --- exact integer bag-of-words counts (exact in bf16 for L <= 256) ------
    counts = jnp.zeros((B, V_pad), jnp.int32)
    counts = counts.at[jnp.arange(B)[:, None], tokens].add(1)
    counts = counts.astype(jnp.bfloat16)
    if B_pad != B:
        counts = jnp.pad(counts, ((0, B_pad - B), (0, 0)))

    emb_p = embedding
    if V_pad != V:
        emb_p = jnp.pad(embedding, ((0, V_pad - V), (0, 0)))
    emb_p = emb_p.astype(jnp.bfloat16)

    # --- lane-dense output: pad fused output dim (C=2) to 128 lanes ----------
    C_pad = _round_up(C, 128)
    wf_t = jnp.pad(w_fused.T, ((0, 0), (0, C_pad - C))).astype(jnp.bfloat16)
    bf_p = jnp.pad(b_fused, (0, C_pad - C)).reshape(1, C_pad)

    grid = (B_pad // TB, k_steps)

    # --- VMEM budget (double-buffered inputs/outputs + f32 accumulator) ------
    vmem_bytes = (2 * (TB * TK * 2 + TK * E * 2 + E * C_pad * 2 + C_pad * 4
                       + TB * C_pad * 4)
                  + TB * E * 4)
    vmem_limit = min(max(int(vmem_bytes * 1.5) + (1 << 20), 4 << 20), 64 << 20)

    flops = 2 * B_pad * V_pad * E + 2 * B_pad * E * C_pad
    bytes_accessed = (2 * B_pad * V_pad                       # counts (bf16)
                      + 2 * V_pad * E * (B_pad // TB)         # emb per batch tile
                      + 2 * E * C_pad + 4 * C_pad             # fused weight/bias
                      + 4 * B_pad * C_pad)                    # output (f32)

    kernel = functools.partial(fasttext_kernel, inv_len=float(1.0 / L))

    out = pl.pallas_call(
        kernel,
        out_shape=jax.ShapeDtypeStruct((B_pad, C_pad), jnp.float32),
        grid=grid,
        in_specs=[
            pl.BlockSpec((TB, TK), lambda i, k: (i, k)),      # counts tile
            pl.BlockSpec((TK, E), lambda i, k: (k, 0)),       # embedding tile
            pl.BlockSpec((E, C_pad), lambda i, k: (0, 0)),    # fused weight
            pl.BlockSpec((1, C_pad), lambda i, k: (0, 0)),    # fused bias
        ],
        out_specs=pl.BlockSpec((TB, C_pad), lambda i, k: (i, 0)),
        scratch_shapes=[pltpu.VMEM((TB, E), jnp.float32)],
        compiler_params=pltpu.CompilerParams(
            dimension_semantics=("parallel", "arbitrary"),
            vmem_limit_bytes=vmem_limit),
        cost_estimate=pl.CostEstimate(flops=flops, transcendentals=0,
                                      bytes_accessed=bytes_accessed),
    )(counts, emb_p, wf_t, bf_p)

    return out[:B, :C]


def fasttext_reference(tokens, embedding, w2, b2, w1, b1):
    emb = jnp.take(embedding, tokens, axis=0)
    m = jnp.mean(emb, axis=1)
    h = m @ w2.T + b2
    return h @ w1.T + b1


if __name__ == "__main__":
    # Small, deterministic problem sizes consistent with the module.
    vocab_size, class_num, embed_dim = 50, 2, 128
    batch, seq_len = 2, 8

    key = jax.random.PRNGKey(0)
    k_emb, k_w2, k_b2, k_w1, k_b1, k_tok = jax.random.split(key, 6)

    embedding = jax.random.normal(k_emb, (vocab_size, embed_dim), jnp.float32)
    w2 = jax.random.normal(k_w2, (embed_dim, embed_dim), jnp.float32) * 0.05
    b2 = jax.random.normal(k_b2, (embed_dim,), jnp.float32) * 0.05
    w1 = jax.random.normal(k_w1, (class_num, embed_dim), jnp.float32) * 0.05
    b1 = jax.random.normal(k_b1, (class_num,), jnp.float32) * 0.05

    tokens = jax.random.randint(k_tok, (batch, seq_len), 0, vocab_size,
                                dtype=jnp.int32)

    out = fasttext_forward(tokens, embedding, w2, b2, w1, b1)
    out = jax.block_until_ready(out)

    ref = fasttext_reference(tokens, embedding, w2, b2, w1, b1)
    assert out.shape == (batch, class_num), out.shape
    # bf16 operands with f32 accumulation: relaxed (but still tight) tolerance.
    assert jnp.allclose(out, ref, atol=2e-2, rtol=2e-2), (out, ref)

    print("KERNEL_OK")
</pallas_src>

<mosaic_0001>
module attributes {stable_mosaic.version = 11 : i64} {
  func.func @fasttext_kernel(%arg0: i32, %arg1: i32, %arg2: memref<16x128xbf16, #tpu.memory_space<vmem>>, %arg3: memref<128x128xbf16, #tpu.memory_space<vmem>>, %arg4: memref<128x128xbf16, #tpu.memory_space<vmem>>, %arg5: memref<1x128xf32, #tpu.memory_space<vmem>>, %arg6: memref<16x128xf32, #tpu.memory_space<vmem>>, %arg7: memref<16x128xf32, #tpu.memory_space<vmem>>) attributes {dimension_semantics = [#tpu.dimension_semantics<parallel>, #tpu.dimension_semantics<arbitrary>], iteration_bounds = array<i64: 1, 1>, scalar_prefetch = 0 : i64, scratch_operands = 1 : i64, tpu.core_type = #tpu.core_type<tc>, window_params = [{transform_indices = @transform_0, window_bounds = array<i64: 16, 128>}, {transform_indices = @transform_1, window_bounds = array<i64: 128, 128>}, {pipeline_mode = #tpu.pipeline_mode<synchronous>, transform_indices = @transform_2, window_bounds = array<i64: 128, 128>}, {pipeline_mode = #tpu.pipeline_mode<synchronous>, transform_indices = @transform_3, window_bounds = array<i64: 1, 128>}, {transform_indices = @transform_4, window_bounds = array<i64: 16, 128>}]} {
    %c0_i32 = arith.constant 0 : i32
    %0 = arith.cmpi eq, %arg1, %c0_i32 : i32
    %1 = arith.extui %0 : i1 to i32
    %c0_i32_0 = arith.constant 0 : i32
    %2 = arith.cmpi ne, %1, %c0_i32_0 : i32
    scf.if %2 {
      %cst_10 = arith.constant 0.000000e+00 : f32
      %12 = vector.broadcast %cst_10 : f32 to vector<16x128xf32>
      %c0_11 = arith.constant 0 : index
      %c0_12 = arith.constant 0 : index
      %13 = vector.load %arg7[%c0_11, %c0_12] : memref<16x128xf32, #tpu.memory_space<vmem>>, vector<16x128xf32>
      tpu.vector_store %arg7[%c0_11, %c0_12], %12 {strides = array<i32>} : memref<16x128xf32, #tpu.memory_space<vmem>>, vector<16x128xf32>,
    } else {
    }
    %c0 = arith.constant 0 : index
    %c0_1 = arith.constant 0 : index
    %3 = vector.load %arg7[%c0, %c0_1] : memref<16x128xf32, #tpu.memory_space<vmem>>, vector<16x128xf32>
    %c0_2 = arith.constant 0 : index
    %c0_3 = arith.constant 0 : index
    %4 = vector.load %arg2[%c0_2, %c0_3] : memref<16x128xbf16, #tpu.memory_space<vmem>>, vector<16x128xbf16>
    %c0_4 = arith.constant 0 : index
    %c0_5 = arith.constant 0 : index
    %5 = vector.load %arg3[%c0_4, %c0_5] : memref<128x128xbf16, #tpu.memory_space<vmem>>, vector<128x128xbf16>
    %cst = arith.constant dense<0.000000e+00> : vector<16x128xf32>
    %6 = tpu.matmul %4, %5, %cst {dimension_numbers = #tpu.dot_dimension_numbers<[1], [0], [0], [1], [0, 0, 1, 1], [], []>} : vector<16x128xbf16>, vector<128x128xbf16>, vector<16x128xf32> -> vector<16x128xf32>
    %7 = arith.addf %3, %6 : vector<16x128xf32>
    %c0_6 = arith.constant 0 : index
    %c0_7 = arith.constant 0 : index
    %8 = vector.load %arg7[%c0_6, %c0_7] : memref<16x128xf32, #tpu.memory_space<vmem>>, vector<16x128xf32>
    tpu.vector_store %arg7[%c0_6, %c0_7], %7 {strides = array<i32>} : memref<16x128xf32, #tpu.memory_space<vmem>>, vector<16x128xf32>,
    %c0_i32_8 = arith.constant 0 : i32
    %9 = arith.cmpi eq, %arg1, %c0_i32_8 : i32
    %10 = arith.extui %9 : i1 to i32
    %c0_i32_9 = arith.constant 0 : i32
    %11 = arith.cmpi ne, %10, %c0_i32_9 : i32
    scf.if %11 {
      %c0_10 = arith.constant 0 : index
      %c0_11 = arith.constant 0 : index
      %12 = vector.load %arg7[%c0_10, %c0_11] : memref<16x128xf32, #tpu.memory_space<vmem>>, vector<16x128xf32>
      %cst_12 = arith.constant 1.250000e-01 : f32
      %13 = vector.broadcast %cst_12 : f32 to vector<16x128xf32>
      %14 = arith.mulf %12, %13 : vector<16x128xf32>
      %15 = arith.truncf %14 : vector<16x128xf32> to vector<16x128xbf16>
      %c0_13 = arith.constant 0 : index
      %c0_14 = arith.constant 0 : index
      %16 = vector.load %arg4[%c0_13, %c0_14] : memref<128x128xbf16, #tpu.memory_space<vmem>>, vector<128x128xbf16>
      %cst_15 = arith.constant dense<0.000000e+00> : vector<16x128xf32>
      %17 = tpu.matmul %15, %16, %cst_15 {dimension_numbers = #tpu.dot_dimension_numbers<[1], [0], [0], [1], [0, 0, 1, 1], [], []>} : vector<16x128xbf16>, vector<128x128xbf16>, vector<16x128xf32> -> vector<16x128xf32>
      %c0_16 = arith.constant 0 : index
      %c0_17 = arith.constant 0 : index
      %18 = vector.load %arg5[%c0_16, %c0_17] : memref<1x128xf32, #tpu.memory_space<vmem>>, vector<1x128xf32>
      %19 = vector.broadcast %18 : vector<1x128xf32> to vector<16x128xf32>
      %20 = arith.addf %17, %19 : vector<16x128xf32>
      %c0_18 = arith.constant 0 : index
      %c0_19 = arith.constant 0 : index
      %21 = vector.load %arg6[%c0_18, %c0_19] : memref<16x128xf32, #tpu.memory_space<vmem>>, vector<16x128xf32>
      tpu.vector_store %arg6[%c0_18, %c0_19], %20 {strides = array<i32>} : memref<16x128xf32, #tpu.memory_space<vmem>>, vector<16x128xf32>,
    } else {
    }
    return
  }
  func.func @transform_0(%arg0: i32, %arg1: i32) -> (i32, i32) {
    %c0_i32 = arith.constant 0 : i32
    return %arg0, %arg1 : i32, i32
  }
  func.func @transform_1(%arg0: i32, %arg1: i32) -> (i32, i32) {
    %c0_i32 = arith.constant 0 : i32
    %c0_i32_0 = arith.constant 0 : i32
    return %arg1, %c0_i32 : i32, i32
  }
  func.func @transform_2(%arg0: i32, %arg1: i32) -> (i32, i32) {
    %c0_i32 = arith.constant 0 : i32
    %c0_i32_0 = arith.constant 0 : i32
    %c0_i32_1 = arith.constant 0 : i32
    return %c0_i32, %c0_i32_0 : i32, i32
  }
  func.func @transform_3(%arg0: i32, %arg1: i32) -> (i32, i32) {
    %c0_i32 = arith.constant 0 : i32
    %c0_i32_0 = arith.constant 0 : i32
    %c0_i32_1 = arith.constant 0 : i32
    return %c0_i32, %c0_i32_0 : i32, i32
  }
  func.func @transform_4(%arg0: i32, %arg1: i32) -> (i32, i32) {
    %c0_i32 = arith.constant 0 : i32
    %c0_i32_0 = arith.constant 0 : i32
    return %arg0, %c0_i32 : i32, i32
  }
}

</mosaic_0001>

<llo_original>
// kernel: tpu_custom_call.1
$region0: #{tpu_custom_call.1}
  #allocation0 [shape = 'u32[]', space=smem, size = 0x4, offset = 0x4, fixed_abs, tag = 'smem constant byte address 0x4 - core index']
  #allocation1 [shape = 'u32[144,128]{1,0:T(1,128)}', space=vmem, size = 0x12000, scoped, tag = 'internal scratch']
  #allocation2 [shape = 'f32[16,128]{1,0:T(8,128)}', space=vmem, size = 0x2000, scoped, tag = 'scratch operand']
  %s0 = inlined_call_operand.hbm [shape: bf16[16,128], index: 0, kind: input, shape index: {}]
  %s1 = inlined_call_operand.hbm [shape: bf16[128,128], index: 1, kind: input, shape index: {}]
  %s2 = inlined_call_operand.hbm [shape: bf16[128,128], index: 2, kind: input, shape index: {}]
  %s3 = inlined_call_operand.vmem [shape: f32[1,128], index: 3, kind: input, shape index: {}]
  %s4 = inlined_call_operand.hbm [shape: f32[16,128], index: 4, kind: output, shape index: {}]
  %s5 = sld [smem:[#allocation0]]
  $region46: #{tpu_custom_call.1} parent=0
    _
  %s7 = ssub.s32 1, %s5
  %s8 = scalar_select 0, %s7, %s5
  $region1: #{tpu_custom_call.1} parent=0
    #allocation3 [shape = 'u8[4096]{0}', space=vmem, size = 0x1000, scoped, tag = 'input window, operand 0, single buffered']
    #allocation4 [shape = 's32[1]{0}', space=sflag, size = 0x4, scoped, tag = 'scoped memory for tpu_custom_call.1']
    #allocation5 [shape = 's32[1]{0}', space=sflag, size = 0x4, scoped, tag = 'scoped memory for tpu_custom_call.1']
    #allocation6 [shape = 'u8[32768]{0}', space=vmem, size = 0x8000, scoped, tag = 'input window, operand 1, single buffered']
    #allocation7 [shape = 's32[1]{0}', space=sflag, size = 0x4, scoped, tag = 'scoped memory for tpu_custom_call.1']
    #allocation8 [shape = 'u8[32768]{0}', space=vmem, size = 0x8000, scoped, tag = 'input window, operand 2, single buffered']
    #allocation9 [shape = 'u8[8192]{0}', space=vmem, size = 0x2000, scoped, tag = 'output window, operand 0, single buffered']
    %9 = vsyncpa [#allocation4], 0
    %10 = vsyncpa [#allocation7], 0
    %11 = vsyncpa [#allocation5], 0
    // Predicated region
    $region2: #{tpu_custom_call.1} parent=1 // pred_check
      _
    $region3: #{tpu_custom_call.1} parent=1 // pred_check_branch
      %13 = sbr.rel (0) target = $region5
    $region4: #{tpu_custom_call.1} parent=1 // pred_region
      %s15 = ssub.s32 128, 128
      %16 = vsyncadd [#allocation4], %s15
      %s17 = sshll.u32 [#allocation3], 4
      %s18 = int_to_ptr.vmem [resolvable:$true] %s17
      %23 = dma.hbm_to_vmem [thread:$0]  %s0, 128, %s18, [#allocation4], 64, 64, 4
    $region5: #{tpu_custom_call.1} parent=1 // pred_fallthru
      _
    // Predicated region
    $region6: #{tpu_custom_call.1} parent=1 // pred_check
      _
    $region7: #{tpu_custom_call.1} parent=1 // pred_check_branch
      %25 = sbr.rel (0) target = $region9
    $region8: #{tpu_custom_call.1} parent=1 // pred_region
      %s27 = ssub.s32 1024, 1024
      %28 = vsyncadd [#allocation7], %s27
      %s29 = sshll.u32 [#allocation6], 4
      %s30 = int_to_ptr.vmem [resolvable:$true] %s29
      %35 = dma.hbm_to_vmem [thread:$0]  %s1, 1024, %s30, [#allocation7], 64, 64, 4
    $region9: #{tpu_custom_call.1} parent=1 // pred_fallthru
      _
    // Predicated region
    $region10: #{tpu_custom_call.1} parent=1 // pred_check
      _
    $region11: #{tpu_custom_call.1} parent=1 // pred_check_branch
      %37 = sbr.rel (0) target = $region13
    $region12: #{tpu_custom_call.1} parent=1 // pred_region
      %s39 = ssub.s32 1024, 1024
      %40 = vsyncadd [#allocation7], %s39
      %s41 = sshll.u32 [#allocation8], 4
      %s42 = int_to_ptr.vmem [resolvable:$true] %s41
      %47 = dma.hbm_to_vmem [thread:$0]  %s2, 1024, %s42, [#allocation7], 64, 64, 4
    $region13: #{tpu_custom_call.1} parent=1 // pred_fallthru
      _
    // Predicated region
    $region14: #{tpu_custom_call.1} parent=1 // pred_check
      _
    $region15: #{tpu_custom_call.1} parent=1 // pred_check_branch
      %49 = sbr.rel (0) target = $region17
    $region16: #{tpu_custom_call.1} parent=1 // pred_region
      _
    $region17: #{tpu_custom_call.1} parent=1 // pred_fallthru
      _
    // Predicated region
    $region18: #{tpu_custom_call.1} parent=1 // pred_check
      _
    $region19: #{tpu_custom_call.1} parent=1 // pred_check_branch
      %51 = sbr.rel (0) target = $region21
    $region20: #{tpu_custom_call.1} parent=1 // pred_region
      %52 = dma.done [#allocation4], 128
    $region21: #{tpu_custom_call.1} parent=1 // pred_fallthru
      _
    // Predicated region
    $region22: #{tpu_custom_call.1} parent=1 // pred_check
      _
    $region23: #{tpu_custom_call.1} parent=1 // pred_check_branch
      %54 = sbr.rel (0) target = $region25
    $region24: #{tpu_custom_call.1} parent=1 // pred_region
      %55 = dma.done [#allocation7], 1024
    $region25: #{tpu_custom_call.1} parent=1 // pred_fallthru
      _
    // Predicated region
    $region26: #{tpu_custom_call.1} parent=1 // pred_check
      _
    $region27: #{tpu_custom_call.1} parent=1 // pred_check_branch
      %57 = sbr.rel (0) target = $region29
    $region28: #{tpu_custom_call.1} parent=1 // pred_region
      %58 = dma.done [#allocation7], 1024
    $region29: #{tpu_custom_call.1} parent=1 // pred_fallthru
      _
    %p60 = scmp.eq.s32.totalorder 0, 0
    // Predicated region
    $region30: #{tpu_custom_call.1} parent=1 // pred_check
      %p61 = pneg %p60
    $region31: #{tpu_custom_call.1} parent=1 // pred_check_branch
      %63 = sbr.rel (%p61) target = $region33
    $region32: #{tpu_custom_call.1} parent=1 // pred_region
      %64 = vst [vmem:[#allocation2] sm:$0xff] 0.0
      %65 = vst [vmem:[#allocation2 + $0x8] sm:$0xff] 0.0
    $region33: #{tpu_custom_call.1} parent=1 // pred_fallthru
      _
    %v66 = vld [vmem:[#allocation2] sm:$0xff]
    %v67 = vld [vmem:[#allocation2 + $0x8] sm:$0xff]
    %v68 = vld [vmem:[#allocation3] sm:$0xf]
    %v69 = vld [vmem:[#allocation3 + $0x4] sm:$0xf]
    %v70 = vld [vmem:[#allocation6] sm:$0xf]
    %v71 = vld [vmem:[#allocation6 + $0x4] sm:$0xf]
    %v72 = vld [vmem:[#allocation6 + $0x8] sm:$0xf]
    %v73 = vld [vmem:[#allocation6 + $0xc] sm:$0xf]
    %v74 = vld [vmem:[#allocation6 + $0x10] sm:$0xf]
    %v75 = vld [vmem:[#allocation6 + $0x14] sm:$0xf]
    %v76 = vld [vmem:[#allocation6 + $0x18] sm:$0xf]
    %v77 = vld [vmem:[#allocation6 + $0x1c] sm:$0xf]
    %v78 = vld [vmem:[#allocation6 + $0x20] sm:$0xf]
    %v79 = vld [vmem:[#allocation6 + $0x24] sm:$0xf]
    %v80 = vld [vmem:[#allocation6 + $0x28] sm:$0xf]
    %v81 = vld [vmem:[#allocation6 + $0x2c] sm:$0xf]
    %v82 = vld [vmem:[#allocation6 + $0x30] sm:$0xf]
    %v83 = vld [vmem:[#allocation6 + $0x34] sm:$0xf]
    %v84 = vld [vmem:[#allocation6 + $0x38] sm:$0xf]
    %v85 = vld [vmem:[#allocation6 + $0x3c] sm:$0xf]
    %v88 = vunpack.c.l.b16 %v68
    %v89 = vunpack.c.l.b16 %v69
    %v90 = vpack.c.b16 %v89, %v88
    %v108 = vunpack.c.l.b16 %v70
    %v109 = vunpack.c.l.b16 %v71
    %v110 = vunpack.c.l.b16 %v72
    %v111 = vunpack.c.l.b16 %v73
    %v112 = vunpack.c.l.b16 %v74
    %v113 = vunpack.c.l.b16 %v75
    %v114 = vunpack.c.l.b16 %v76
    %v115 = vunpack.c.l.b16 %v77
    %v116 = vunpack.c.l.b16 %v78
    %v117 = vunpack.c.l.b16 %v79
    %v118 = vunpack.c.l.b16 %v80
    %v119 = vunpack.c.l.b16 %v81
    %v120 = vunpack.c.l.b16 %v82
    %v121 = vunpack.c.l.b16 %v83
    %v122 = vunpack.c.l.b16 %v84
    %v123 = vunpack.c.l.b16 %v85
    %v124 = vpack.c.b16 %v109, %v108
    %v125 = vpack.c.b16 %v111, %v110
    %v126 = vpack.c.b16 %v113, %v112
    %v127 = vpack.c.b16 %v115, %v114
    %v128 = vpack.c.b16 %v117, %v116
    %v129 = vpack.c.b16 %v119, %v118
    %v130 = vpack.c.b16 %v121, %v120
    %v131 = vpack.c.b16 %v123, %v122
    %140 = vmatprep.subr.bf16.mxu0 0
    %141 = vmatpush1.bf16.msra.mxu0 %v124
    %142 = vmatprep.subr.bf16.mxu0 0
    %143 = vmatpush1.bf16.msra.mxu0 %v125
    %144 = vmatprep.subr.bf16.mxu0 0
    %145 = vmatpush1.bf16.msra.mxu0 %v126
    %146 = vmatprep.subr.bf16.mxu0 0
    %147 = vmatpush1.bf16.msra.mxu0 %v127
    %148 = vmatprep.subr.bf16.mxu0 0
    %149 = vmatpush1.bf16.msra.mxu0 %v128
    %150 = vmatprep.subr.bf16.mxu0 0
    %151 = vmatpush1.bf16.msra.mxu0 %v129
    %152 = vmatprep.subr.bf16.mxu0 0
    %153 = vmatpush1.bf16.msra.mxu0 %v130
    %154 = vmatprep.subr.bf16.mxu0 0
    %155 = vmatpush1.bf16.msra.mxu0 %v131
    %156 = vmatprep.subr.bf16.mxu0 0
    %157 = vmatpush1.bf16.msra.mxu0 0
    %158 = vmatprep.subr.bf16.mxu0 0
    %159 = vmatpush1.bf16.msra.mxu0 0
    %160 = vmatprep.subr.bf16.mxu0 0
    %161 = vmatpush1.bf16.msra.mxu0 0
    %162 = vmatprep.subr.bf16.mxu0 0
    %163 = vmatpush1.bf16.msra.mxu0 0
    %164 = vmatprep.subr.bf16.mxu0 0
    %165 = vmatpush1.bf16.msra.mxu0 0
    %166 = vmatprep.subr.bf16.mxu0 0
    %167 = vmatpush1.bf16.msra.mxu0 0
    %168 = vmatprep.subr.bf16.mxu0 0
    %169 = vmatpush1.bf16.msra.mxu0 0
    %170 = vmatprep.subr.bf16.mxu0 0
    %171 = vmatpush1.bf16.msra.mxu0 0
    %172 = vmatprep.mubr.bf16.mxu0 0
    %173 = vmatmul.mubr.bf16.gmra.mrb[0].mxu0 %v90
    %v174 = vpop.f32.mrb[0].mxu0
    %v175 = vadd.f32 0.0, %v174
    %v176 = vpop.f32.mrb[0].mxu0
    %v177 = vpop.f32.mrb[0].mxu0
    %v178 = vadd.f32 0.0, %v177
    %v179 = vpop.f32.mrb[0].mxu0
    %180 = vdwg.mxu0
    %v181 = vadd.f32 %v66, %v175
    %v182 = vadd.f32 %v67, %v178
    %183 = vst [vmem:[#allocation2] sm:$0xff] %v181
    %184 = vst [vmem:[#allocation2 + $0x8] sm:$0xff] %v182
    // Predicated region
    $region34: #{tpu_custom_call.1} parent=1 // pred_check
      %p185 = pneg %p60
    $region35: #{tpu_custom_call.1} parent=1 // pred_check_branch
      %187 = sbr.rel (%p185) target = $region37
    $region36: #{tpu_custom_call.1} parent=1 // pred_region
      %v188 = vld [vmem:[#allocation2] sm:$0xff]
      %v189 = vld [vmem:[#allocation2 + $0x8] sm:$0xff]
      %v190 = vmul.f32 %v188, 0.125
      %v191 = vmul.f32 %v189, 0.125
      %v192 = vpack.c.bf16 %v191, %v190
      %v193 = vld [vmem:[#allocation8] sm:$0xf]
      %v194 = vld [vmem:[#allocation8 + $0x4] sm:$0xf]
      %v195 = vld [vmem:[#allocation8 + $0x8] sm:$0xf]
      %v196 = vld [vmem:[#allocation8 + $0xc] sm:$0xf]
      %v197 = vld [vmem:[#allocation8 + $0x10] sm:$0xf]
      %v198 = vld [vmem:[#allocation8 + $0x14] sm:$0xf]
      %v199 = vld [vmem:[#allocation8 + $0x18] sm:$0xf]
      %v200 = vld [vmem:[#allocation8 + $0x1c] sm:$0xf]
      %v201 = vld [vmem:[#allocation8 + $0x20] sm:$0xf]
      %v202 = vld [vmem:[#allocation8 + $0x24] sm:$0xf]
      %v203 = vld [vmem:[#allocation8 + $0x28] sm:$0xf]
      %v204 = vld [vmem:[#allocation8 + $0x2c] sm:$0xf]
      %v205 = vld [vmem:[#allocation8 + $0x30] sm:$0xf]
      %v206 = vld [vmem:[#allocation8 + $0x34] sm:$0xf]
      %v207 = vld [vmem:[#allocation8 + $0x38] sm:$0xf]
      %v208 = vld [vmem:[#allocation8 + $0x3c] sm:$0xf]
      %v209 = vld [vmem:[%s3] sm:$0x1]
      %v211 = vlaneseq
      %v212 = vshrl.u32 %v211, 7
      %v213 = vsub.s32 0, %v212
      %v214 = vrot.slane %v209, %v213
      %v232 = vunpack.c.l.b16 %v193
      %v233 = vunpack.c.l.b16 %v194
      %v234 = vunpack.c.l.b16 %v195
      %v235 = vunpack.c.l.b16 %v196
      %v236 = vunpack.c.l.b16 %v197
      %v237 = vunpack.c.l.b16 %v198
      %v238 = vunpack.c.l.b16 %v199
      %v239 = vunpack.c.l.b16 %v200
      %v240 = vunpack.c.l.b16 %v201
      %v241 = vunpack.c.l.b16 %v202
      %v242 = vunpack.c.l.b16 %v203
      %v243 = vunpack.c.l.b16 %v204
      %v244 = vunpack.c.l.b16 %v205
      %v245 = vunpack.c.l.b16 %v206
      %v246 = vunpack.c.l.b16 %v207
      %v247 = vunpack.c.l.b16 %v208
      %v248 = vpack.c.b16 %v233, %v232
      %v249 = vpack.c.b16 %v235, %v234
      %v250 = vpack.c.b16 %v237, %v236
      %v251 = vpack.c.b16 %v239, %v238
      %v252 = vpack.c.b16 %v241, %v240
      %v253 = vpack.c.b16 %v243, %v242
      %v254 = vpack.c.b16 %v245, %v244
      %v255 = vpack.c.b16 %v247, %v246
      %264 = vmatprep.subr.bf16.mxu0 0
      %265 = vmatpush1.bf16.msra.mxu0 %v248
      %266 = vmatprep.subr.bf16.mxu0 0
      %267 = vmatpush1.bf16.msra.mxu0 %v249
      %268 = vmatprep.subr.bf16.mxu0 0
      %269 = vmatpush1.bf16.msra.mxu0 %v250
      %270 = vmatprep.subr.bf16.mxu0 0
      %271 = vmatpush1.bf16.msra.mxu0 %v251
      %272 = vmatprep.subr.bf16.mxu0 0
      %273 = vmatpush1.bf16.msra.mxu0 %v252
      %274 = vmatprep.subr.bf16.mxu0 0
      %275 = vmatpush1.bf16.msra.mxu0 %v253
      %276 = vmatprep.subr.bf16.mxu0 0
      %277 = vmatpush1.bf16.msra.mxu0 %v254
      %278 = vmatprep.subr.bf16.mxu0 0
      %279 = vmatpush1.bf16.msra.mxu0 %v255
      %280 = vmatprep.subr.bf16.mxu0 0
      %281 = vmatpush1.bf16.msra.mxu0 0
      %282 = vmatprep.subr.bf16.mxu0 0
      %283 = vmatpush1.bf16.msra.mxu0 0
      %284 = vmatprep.subr.bf16.mxu0 0
      %285 = vmatpush1.bf16.msra.mxu0 0
      %286 = vmatprep.subr.bf16.mxu0 0
      %287 = vmatpush1.bf16.msra.mxu0 0
      %288 = vmatprep.subr.bf16.mxu0 0
      %289 = vmatpush1.bf16.msra.mxu0 0
      %290 = vmatprep.subr.bf16.mxu0 0
      %291 = vmatpush1.bf16.msra.mxu0 0
      %292 = vmatprep.subr.bf16.mxu0 0
      %293 = vmatpush1.bf16.msra.mxu0 0
      %294 = vmatprep.subr.bf16.mxu0 0
      %295 = vmatpush1.bf16.msra.mxu0 0
      %296 = vmatprep.mubr.bf16.mxu0 0
      %297 = vmatmul.mubr.bf16.gmra.mrb[0].mxu0 %v192
      %v298 = vpop.f32.mrb[0].mxu0
      %v299 = vadd.f32 %v214, %v298
      %v300 = vpop.f32.mrb[0].mxu0
      %v301 = vpop.f32.mrb[0].mxu0
      %v302 = vadd.f32 %v214, %v301
      %v303 = vpop.f32.mrb[0].mxu0
      %304 = vdwg.mxu0
      %305 = vst [vmem:[#allocation9] sm:$0xff] %v299
      %306 = vst [vmem:[#allocation9 + $0x8] sm:$0xff] %v302
    $region37: #{tpu_custom_call.1} parent=1 // pred_fallthru
      _
    // Predicated region
    $region38: #{tpu_custom_call.1} parent=1 // pred_check
      _
    $region39: #{tpu_custom_call.1} parent=1 // pred_check_branch
      %308 = sbr.rel (0) target = $region41
    $region40: #{tpu_custom_call.1} parent=1 // pred_region
      %s310 = ssub.s32 256, 256
      %311 = vsyncadd [#allocation5], %s310
      %s312 = sshll.u32 [#allocation9], 4
      %s313 = int_to_ptr.vmem [resolvable:$true] %s312
      %318 = dma.vmem_to_hbm [thread:$0]  %s313, 256, %s4, [#allocation5], 128, 128, 8
    $region41: #{tpu_custom_call.1} parent=1 // pred_fallthru
      _
    // Predicated region
    $region42: #{tpu_custom_call.1} parent=1 // pred_check
      _
    $region43: #{tpu_custom_call.1} parent=1 // pred_check_branch
      %320 = sbr.rel (0) target = $region45
    $region44: #{tpu_custom_call.1} parent=1 // pred_region
      %321 = dma.done [#allocation5], 256
    $region45: #{tpu_custom_call.1} parent=1 // pred_fallthru
      _
    %322 = vsyncpa [#allocation4], 1
    %323 = vsyncpa [#allocation7], 1
    %324 = vsyncpa [#allocation5], 1

</llo_original>
